<compile_context>
chip_gen: v7x
topology: tpu7x:2x2x1
jax: 0.10.0
libtpu: 0.0.40
codegen_flags: <defaults>
</compile_context>

<pallas_src>
import functools

import jax
import jax.numpy as jnp
from jax.experimental import pallas as pl
from jax.experimental.pallas import tpu as pltpu


_VMEM_SPEC = pl.BlockSpec(memory_space=pltpu.MemorySpace.VMEM)


def _round_up(x, m):
    return (x + m - 1) // m * m


# ------------------------------ fused kernel -------------------------------- #

def _protonet_fused_kernel(x_ref, labels_ref, w1_ref, b1_ref, w2_ref, b2_ref,
                           out_ref, *, n_support, n_classes, d_real):
    """Backbone + prototypes + squared-euclidean argmin, fully fused.

    x_ref      : (n_support + n_query, F)  bf16   flattened audio (support first)
    labels_ref : (1, n_support)            int32  episode-local labels
    w1_ref     : (F, Hp) bf16, b1_ref: (1, Hp) f32
    w2_ref     : (Hp, Dp) bf16, b2_ref: (1, Dp) f32   (zero-padded to 128 lanes)
    out_ref    : (n_query, 128) int32 lane-dense predictions (same value per lane)
    """
    # ---- backbone: two bf16 MXU matmuls with f32 accumulation ---------------
    h = jnp.dot(x_ref[...], w1_ref[...], preferred_element_type=jnp.float32)
    h = jnp.maximum(h + b1_ref[...], 0.0)                       # f32
    emb = jnp.dot(h.astype(jnp.bfloat16), w2_ref[...],
                  preferred_element_type=jnp.float32) + b2_ref[...]   # (N, Dp) f32

    sup_e = emb[:n_support]                                      # (Ns, Dp)
    qry_e = emb[n_support:]                                      # (Nq, Dp)

    # ---- prototypes: per-class mean via (scaled) one-hot matmul -------------
    labels = labels_ref[...]                                     # (1, Ns) int32
    cls = jax.lax.broadcasted_iota(jnp.int32, (n_classes, n_support), 0)
    onehot = (labels == cls).astype(jnp.float32)                 # (C, Ns)
    counts = jnp.sum(onehot, axis=1, keepdims=True)              # (C, 1)
    inv_counts = 1.0 / counts                                    # tiny, exact
    protos = jnp.dot(onehot, sup_e,
                     preferred_element_type=jnp.float32) * inv_counts  # (C, Dp)

    # ---- squared-euclidean argmin ------------------------------------------
    # argmin_c ||q - p_c||^2 == argmin_c (||p_c||^2 - 2 q.p_c): fold ||p||^2 into
    # a padded (zero) embedding lane so one MXU matmul yields the scores directly.
    p2 = jnp.sum(protos * protos, axis=1, keepdims=True)         # (C, 1)
    lane_p = jax.lax.broadcasted_iota(jnp.int32, protos.shape, 1)
    protos_aug = jnp.where(lane_p == d_real, p2, protos)         # stash ||p||^2
    lane_q = jax.lax.broadcasted_iota(jnp.int32, qry_e.shape, 1)
    q_aug = jnp.where(lane_q == d_real, 1.0, -2.0 * qry_e)       # (Nq, Dp)
    scores = jax.lax.dot_general(q_aug, protos_aug,
                                 (((1,), (1,)), ((), ())),
                                 preferred_element_type=jnp.float32)   # (Nq, C)

    # first-index argmin over classes (== torch.argmax of -d^2)
    idx = jax.lax.broadcasted_iota(jnp.int32, scores.shape, 1)
    smin = jnp.min(scores, axis=1, keepdims=True)
    preds = jnp.min(jnp.where(scores <= smin, idx, n_classes),
                    axis=1, keepdims=True)                       # (Nq, 1) int32

    # lane-dense store (full unmasked vst); wrapper slices lane 0
    out_ref[...] = jnp.broadcast_to(preds.astype(jnp.int32), out_ref.shape)


# ------------------------------ JAX wrapper --------------------------------- #

@functools.partial(jax.jit, static_argnames=("n_classes",))
def protonet_forward(support_audio, support_labels, query_audio, n_classes, params):
    """Returns int32 predictions of shape (n_query,)."""
    w1, b1, w2, b2 = params
    n_sup = support_audio.shape[0]
    n_qry = query_audio.shape[0]
    feat, hid = w1.shape
    d = w2.shape[1]
    h_pad = _round_up(hid, 128)
    d_pad = _round_up(d + 1, 128)    # always >= 1 spare zero lane for ||p||^2

    # layout plumbing (glue): flatten, concat support+query, pad lanes, cast to bf16
    x_all = jnp.concatenate(
        [support_audio.reshape(n_sup, -1), query_audio.reshape(n_qry, -1)],
        axis=0).astype(jnp.bfloat16)                                  # (Ns+Nq, F)
    w1p = jnp.zeros((feat, h_pad), jnp.bfloat16).at[:, :hid].set(w1.astype(jnp.bfloat16))
    b1p = jnp.zeros((1, h_pad), jnp.float32).at[:, :hid].set(b1.reshape(1, -1))
    w2p = jnp.zeros((h_pad, d_pad), jnp.bfloat16).at[:hid, :d].set(w2.astype(jnp.bfloat16))
    b2p = jnp.zeros((1, d_pad), jnp.float32).at[:, :d].set(b2.reshape(1, -1))
    labels_row = support_labels.reshape(1, n_sup).astype(jnp.int32)

    kernel = functools.partial(_protonet_fused_kernel,
                               n_support=n_sup, n_classes=n_classes, d_real=d)
    out = pl.pallas_call(
        kernel,
        out_shape=jax.ShapeDtypeStruct((n_qry, 128), jnp.int32),
        in_specs=[_VMEM_SPEC] * 6,
        out_specs=_VMEM_SPEC,
    )(x_all, labels_row, w1p, b1p, w2p, b2p)
    return out[:, 0]


# --------------------------- pure-JAX reference ------------------------------ #

def protonet_reference(support_audio, support_labels, query_audio, n_classes, params):
    """Torch-style reference (prototype mean + cdist^2 argmax) with the same
    bf16-input / f32-accumulate backbone numerics as the kernel."""
    w1, b1, w2, b2 = params
    w1b, w2b = w1.astype(jnp.bfloat16), w2.astype(jnp.bfloat16)

    def bb(a):
        x = a.reshape(a.shape[0], -1).astype(jnp.bfloat16)
        h = jnp.maximum(jnp.dot(x, w1b, preferred_element_type=jnp.float32)
                        + b1.reshape(1, -1), 0.0)
        return (jnp.dot(h.astype(jnp.bfloat16), w2b,
                        preferred_element_type=jnp.float32) + b2.reshape(1, -1))

    sup_e, qry_e = bb(support_audio), bb(query_audio)
    protos = jnp.stack([sup_e[support_labels == c].mean(axis=0)
                        for c in range(n_classes)])
    d2 = jnp.sum((qry_e[:, None, :] - protos[None, :, :]) ** 2, axis=-1)
    return jnp.argmax(-d2, axis=1)


# ---------------------------------- main ------------------------------------ #

if __name__ == "__main__":
    key = jax.random.PRNGKey(0)

    # Episode setup: 4 classes, 2 shots, 8 queries; mono audio of 128 samples.
    n_classes, n_shot, n_query = 4, 2, 8
    n_support = n_classes * n_shot
    n_channels, n_samples = 1, 128
    feat = n_channels * n_samples            # F = 128
    hidden, emb_dim = 64, 32                 # H = 64, D = 32 (lane-padded to 128)

    k_sa, k_qa, k_w1, k_b1, k_w2, k_b2 = jax.random.split(key, 6)

    support_audio = jax.random.normal(k_sa, (n_support, n_channels, n_samples),
                                      dtype=jnp.float32)
    query_audio = jax.random.normal(k_qa, (n_query, n_channels, n_samples),
                                    dtype=jnp.float32)
    # episode-local labels 0..n_classes-1, n_shot each (equal counts, as
    # required by torch.stack in the original forward)
    support_labels = jnp.repeat(jnp.arange(n_classes, dtype=jnp.int32), n_shot)

    # deterministic backbone parameters
    w1 = jax.random.normal(k_w1, (feat, hidden), dtype=jnp.float32) * (1.0 / feat ** 0.5)
    b1 = jax.random.normal(k_b1, (1, hidden), dtype=jnp.float32) * 0.01
    w2 = jax.random.normal(k_w2, (hidden, emb_dim), dtype=jnp.float32) * (1.0 / hidden ** 0.5)
    b2 = jax.random.normal(k_b2, (1, emb_dim), dtype=jnp.float32) * 0.01
    params = (w1, b1, w2, b2)

    preds = protonet_forward(support_audio, support_labels, query_audio,
                             n_classes, params)
    preds = jax.block_until_ready(preds)

    ref = protonet_reference(support_audio, support_labels, query_audio,
                             n_classes, params)
    assert preds.shape == (n_query,)
    assert jnp.array_equal(preds, ref.astype(preds.dtype)), (preds, ref)

    print("KERNEL_OK")
</pallas_src>

<mosaic_0001>
module attributes {stable_mosaic.version = 11 : i64} {
  func.func @_protonet_fused_kernel(%arg0: memref<16x128xbf16, #tpu.memory_space<vmem>>, %arg1: memref<1x8xi32, #tpu.memory_space<vmem>>, %arg2: memref<128x128xbf16, #tpu.memory_space<vmem>>, %arg3: memref<1x128xf32, #tpu.memory_space<vmem>>, %arg4: memref<128x128xbf16, #tpu.memory_space<vmem>>, %arg5: memref<1x128xf32, #tpu.memory_space<vmem>>, %arg6: memref<8x128xi32, #tpu.memory_space<vmem>>) attributes {dimension_semantics = [], scalar_prefetch = 0 : i64, scratch_operands = 0 : i64, tpu.core_type = #tpu.core_type<tc>} {
    %c0 = arith.constant 0 : index
    %c0_0 = arith.constant 0 : index
    %0 = vector.load %arg0[%c0, %c0_0] : memref<16x128xbf16, #tpu.memory_space<vmem>>, vector<16x128xbf16>
    %c0_1 = arith.constant 0 : index
    %c0_2 = arith.constant 0 : index
    %1 = vector.load %arg2[%c0_1, %c0_2] : memref<128x128xbf16, #tpu.memory_space<vmem>>, vector<128x128xbf16>
    %cst = arith.constant dense<0.000000e+00> : vector<16x128xf32>
    %2 = tpu.matmul %0, %1, %cst {dimension_numbers = #tpu.dot_dimension_numbers<[1], [0], [0], [1], [0, 0, 1, 1], [], []>} : vector<16x128xbf16>, vector<128x128xbf16>, vector<16x128xf32> -> vector<16x128xf32>
    %c0_3 = arith.constant 0 : index
    %c0_4 = arith.constant 0 : index
    %3 = vector.load %arg3[%c0_3, %c0_4] : memref<1x128xf32, #tpu.memory_space<vmem>>, vector<1x128xf32>
    %4 = vector.broadcast %3 : vector<1x128xf32> to vector<16x128xf32>
    %5 = arith.addf %2, %4 : vector<16x128xf32>
    %cst_5 = arith.constant 0.000000e+00 : f32
    %6 = vector.broadcast %cst_5 : f32 to vector<16x128xf32>
    %7 = arith.maximumf %5, %6 : vector<16x128xf32>
    %8 = arith.truncf %7 : vector<16x128xf32> to vector<16x128xbf16>
    %c0_6 = arith.constant 0 : index
    %c0_7 = arith.constant 0 : index
    %9 = vector.load %arg4[%c0_6, %c0_7] : memref<128x128xbf16, #tpu.memory_space<vmem>>, vector<128x128xbf16>
    %cst_8 = arith.constant dense<0.000000e+00> : vector<16x128xf32>
    %10 = tpu.matmul %8, %9, %cst_8 {dimension_numbers = #tpu.dot_dimension_numbers<[1], [0], [0], [1], [0, 0, 1, 1], [], []>} : vector<16x128xbf16>, vector<128x128xbf16>, vector<16x128xf32> -> vector<16x128xf32>
    %c0_9 = arith.constant 0 : index
    %c0_10 = arith.constant 0 : index
    %11 = vector.load %arg5[%c0_9, %c0_10] : memref<1x128xf32, #tpu.memory_space<vmem>>, vector<1x128xf32>
    %12 = vector.broadcast %11 : vector<1x128xf32> to vector<16x128xf32>
    %13 = arith.addf %10, %12 : vector<16x128xf32>
    %14 = vector.extract_strided_slice %13 {offsets = [0, 0], sizes = [8, 128], strides = [1, 1]} : vector<16x128xf32> to vector<8x128xf32>
    %15 = vector.extract_strided_slice %13 {offsets = [8, 0], sizes = [8, 128], strides = [1, 1]} : vector<16x128xf32> to vector<8x128xf32>
    %c0_11 = arith.constant 0 : index
    %c0_12 = arith.constant 0 : index
    %16 = vector.load %arg1[%c0_11, %c0_12] : memref<1x8xi32, #tpu.memory_space<vmem>>, vector<1x8xi32>
    %17 = tpu.iota {dimensions = array<i32: 0>} : vector<4x8xi32>
    %18 = vector.broadcast %16 : vector<1x8xi32> to vector<4x8xi32>
    %19 = arith.cmpi eq, %18, %17 : vector<4x8xi32>
    %20 = arith.extui %19 : vector<4x8xi1> to vector<4x8xi32>
    %21 = arith.sitofp %20 : vector<4x8xi32> to vector<4x8xf32>
    %cst_13 = arith.constant dense<0.000000e+00> : vector<4xf32>
    %22 = vector.multi_reduction <add>, %21, %cst_13 [1] : vector<4x8xf32> to vector<4xf32>
    %23 = vector.shape_cast %22 : vector<4xf32> to vector<4x1xf32>
    %cst_14 = arith.constant 1.000000e+00 : f32
    %24 = vector.broadcast %cst_14 : f32 to vector<4x1xf32>
    %25 = arith.divf %24, %23 : vector<4x1xf32>
    %cst_15 = arith.constant dense<0.000000e+00> : vector<4x128xf32>
    %26 = tpu.matmul %21, %14, %cst_15 {dimension_numbers = #tpu.dot_dimension_numbers<[1], [0], [0], [1], [0, 0, 1, 1], [], []>} : vector<4x8xf32>, vector<8x128xf32>, vector<4x128xf32> -> vector<4x128xf32>
    %27 = vector.broadcast %25 : vector<4x1xf32> to vector<4x128xf32>
    %28 = arith.mulf %26, %27 : vector<4x128xf32>
    %29 = arith.mulf %28, %28 : vector<4x128xf32>
    %cst_16 = arith.constant dense<0.000000e+00> : vector<4xf32>
    %30 = vector.multi_reduction <add>, %29, %cst_16 [1] : vector<4x128xf32> to vector<4xf32>
    %31 = vector.shape_cast %30 : vector<4xf32> to vector<4x1xf32>
    %32 = tpu.iota {dimensions = array<i32: 1>} : vector<4x128xi32>
    %c32_i32 = arith.constant 32 : i32
    %33 = vector.broadcast %c32_i32 : i32 to vector<4x128xi32>
    %34 = arith.cmpi eq, %32, %33 : vector<4x128xi32>
    %35 = vector.shape_cast %31 : vector<4x1xf32> to vector<4x1xf32>
    %36 = vector.broadcast %35 : vector<4x1xf32> to vector<4x128xf32>
    %37 = arith.select %34, %36, %28 : vector<4x128xi1>, vector<4x128xf32>
    %38 = tpu.iota {dimensions = array<i32: 1>} : vector<8x128xi32>
    %c32_i32_17 = arith.constant 32 : i32
    %39 = vector.broadcast %c32_i32_17 : i32 to vector<8x128xi32>
    %40 = arith.cmpi eq, %38, %39 : vector<8x128xi32>
    %cst_18 = arith.constant -2.000000e+00 : f32
    %41 = vector.broadcast %cst_18 : f32 to vector<8x128xf32>
    %42 = arith.mulf %41, %15 : vector<8x128xf32>
    %cst_19 = arith.constant 1.000000e+00 : f32
    %43 = vector.broadcast %cst_19 : f32 to vector<8x128xf32>
    %44 = arith.select %40, %43, %42 : vector<8x128xi1>, vector<8x128xf32>
    %cst_20 = arith.constant dense<0.000000e+00> : vector<8x4xf32>
    %45 = tpu.matmul %44, %37, %cst_20 {dimension_numbers = #tpu.dot_dimension_numbers<[1], [1], [0], [0], [0, 0, 1, 0], [], []>} : vector<8x128xf32>, vector<4x128xf32>, vector<8x4xf32> -> vector<8x4xf32>
    %46 = tpu.iota {dimensions = array<i32: 1>} : vector<8x4xi32>
    %cst_21 = arith.constant dense<0x7F800000> : vector<8xf32>
    %47 = vector.multi_reduction <minimumf>, %45, %cst_21 [1] : vector<8x4xf32> to vector<8xf32>
    %48 = vector.shape_cast %47 : vector<8xf32> to vector<8x1xf32>
    %49 = vector.broadcast %48 : vector<8x1xf32> to vector<8x4xf32>
    %50 = arith.cmpf ole, %45, %49 : vector<8x4xf32>
    %c4_i32 = arith.constant 4 : i32
    %51 = vector.broadcast %c4_i32 : i32 to vector<8x4xi32>
    %52 = arith.select %50, %46, %51 : vector<8x4xi1>, vector<8x4xi32>
    %cst_22 = arith.constant dense<2147483647> : vector<8xi32>
    %53 = vector.multi_reduction <minsi>, %52, %cst_22 [1] : vector<8x4xi32> to vector<8xi32>
    %54 = vector.shape_cast %53 : vector<8xi32> to vector<8x1xi32>
    %55 = vector.shape_cast %54 : vector<8x1xi32> to vector<8x1xi32>
    %56 = vector.broadcast %55 : vector<8x1xi32> to vector<8x128xi32>
    %c0_23 = arith.constant 0 : index
    %c0_24 = arith.constant 0 : index
    %57 = vector.load %arg6[%c0_23, %c0_24] : memref<8x128xi32, #tpu.memory_space<vmem>>, vector<8x128xi32>
    tpu.vector_store %arg6[%c0_23, %c0_24], %56 {strides = array<i32>} : memref<8x128xi32, #tpu.memory_space<vmem>>, vector<8x128xi32>,
    return
  }
}

</mosaic_0001>

<llo_original>
// kernel: protonet_forward.1
$region0: #{protonet_forward.1}
  #allocation0 [shape = 'u32[]', space=smem, size = 0x4, offset = 0x4, fixed_abs, tag = 'smem constant byte address 0x4 - core index']
  #allocation1 [shape = 'u32[144,128]{1,0:T(1,128)}', space=vmem, size = 0x12000, scoped, tag = 'internal scratch']
  %s0 = inlined_call_operand.vmem [shape: bf16[16,128], index: 0, kind: input, shape index: {}]
  %s1 = inlined_call_operand.vmem [shape: s32[1,8], index: 1, kind: input, shape index: {}]
  %s2 = inlined_call_operand.vmem [shape: bf16[128,128], index: 2, kind: input, shape index: {}]
  %s3 = inlined_call_operand.vmem [shape: f32[1,128], index: 3, kind: input, shape index: {}]
  %s4 = inlined_call_operand.vmem [shape: bf16[128,128], index: 4, kind: input, shape index: {}]
  %s5 = inlined_call_operand.vmem [shape: f32[1,128], index: 5, kind: input, shape index: {}]
  %s6 = inlined_call_operand.vmem [shape: s32[8,128], index: 6, kind: output, shape index: {}]
  %s7 = sld [smem:[#allocation0]]
  $region34: #{protonet_forward.1} parent=0
    _
  %s9 = ssub.s32 1, %s7
  %s10 = scalar_select 0, %s9, %s7
  // Predicated region
  $region2: #{protonet_forward.1} parent=0 // pred_check
    _
  $region3: #{protonet_forward.1} parent=0 // pred_check_branch
    %12 = sbr.rel (0) target = $region5
  $region4: #{protonet_forward.1} parent=0 // pred_region
    _
  $region5: #{protonet_forward.1} parent=0 // pred_fallthru
    _
  // Predicated region
  $region6: #{protonet_forward.1} parent=0 // pred_check
    _
  $region7: #{protonet_forward.1} parent=0 // pred_check_branch
    %14 = sbr.rel (0) target = $region9
  $region8: #{protonet_forward.1} parent=0 // pred_region
    _
  $region9: #{protonet_forward.1} parent=0 // pred_fallthru
    _
  // Predicated region
  $region10: #{protonet_forward.1} parent=0 // pred_check
    _
  $region11: #{protonet_forward.1} parent=0 // pred_check_branch
    %16 = sbr.rel (0) target = $region13
  $region12: #{protonet_forward.1} parent=0 // pred_region
    _
  $region13: #{protonet_forward.1} parent=0 // pred_fallthru
    _
  // Predicated region
  $region14: #{protonet_forward.1} parent=0 // pred_check
    _
  $region15: #{protonet_forward.1} parent=0 // pred_check_branch
    %18 = sbr.rel (0) target = $region17
  $region16: #{protonet_forward.1} parent=0 // pred_region
    _
  $region17: #{protonet_forward.1} parent=0 // pred_fallthru
    _
  // Predicated region
  $region18: #{protonet_forward.1} parent=0 // pred_check
    _
  $region19: #{protonet_forward.1} parent=0 // pred_check_branch
    %20 = sbr.rel (0) target = $region21
  $region20: #{protonet_forward.1} parent=0 // pred_region
    _
  $region21: #{protonet_forward.1} parent=0 // pred_fallthru
    _
  // Predicated region
  $region22: #{protonet_forward.1} parent=0 // pred_check
    _
  $region23: #{protonet_forward.1} parent=0 // pred_check_branch
    %22 = sbr.rel (0) target = $region25
  $region24: #{protonet_forward.1} parent=0 // pred_region
    _
  $region25: #{protonet_forward.1} parent=0 // pred_fallthru
    _
  %v24 = vld [vmem:[%s0] sm:$0xf]
  %v25 = vld [vmem:[%s0 + $0x4] sm:$0xf]
  %v26 = vld [vmem:[%s2] sm:$0xf]
  %v27 = vld [vmem:[%s2 + $0x4] sm:$0xf]
  %v28 = vld [vmem:[%s2 + $0x8] sm:$0xf]
  %v29 = vld [vmem:[%s2 + $0xc] sm:$0xf]
  %v30 = vld [vmem:[%s2 + $0x10] sm:$0xf]
  %v31 = vld [vmem:[%s2 + $0x14] sm:$0xf]
  %v32 = vld [vmem:[%s2 + $0x18] sm:$0xf]
  %v33 = vld [vmem:[%s2 + $0x1c] sm:$0xf]
  %v34 = vld [vmem:[%s2 + $0x20] sm:$0xf]
  %v35 = vld [vmem:[%s2 + $0x24] sm:$0xf]
  %v36 = vld [vmem:[%s2 + $0x28] sm:$0xf]
  %v37 = vld [vmem:[%s2 + $0x2c] sm:$0xf]
  %v38 = vld [vmem:[%s2 + $0x30] sm:$0xf]
  %v39 = vld [vmem:[%s2 + $0x34] sm:$0xf]
  %v40 = vld [vmem:[%s2 + $0x38] sm:$0xf]
  %v41 = vld [vmem:[%s2 + $0x3c] sm:$0xf]
  %v42 = vld [vmem:[%s3] sm:$0x1]
  %v44 = vlaneseq
  %v45 = vshrl.u32 %v44, 7
  %v46 = vsub.s32 0, %v45
  %v47 = vrot.slane %v42, %v46
  %v51 = vunpack.c.l.b16 %v24
  %v52 = vunpack.c.l.b16 %v25
  %v53 = vpack.c.b16 %v52, %v51
  %v71 = vunpack.c.l.b16 %v26
  %v72 = vunpack.c.l.b16 %v27
  %v73 = vunpack.c.l.b16 %v28
  %v74 = vunpack.c.l.b16 %v29
  %v75 = vunpack.c.l.b16 %v30
  %v76 = vunpack.c.l.b16 %v31
  %v77 = vunpack.c.l.b16 %v32
  %v78 = vunpack.c.l.b16 %v33
  %v79 = vunpack.c.l.b16 %v34
  %v80 = vunpack.c.l.b16 %v35
  %v81 = vunpack.c.l.b16 %v36
  %v82 = vunpack.c.l.b16 %v37
  %v83 = vunpack.c.l.b16 %v38
  %v84 = vunpack.c.l.b16 %v39
  %v85 = vunpack.c.l.b16 %v40
  %v86 = vunpack.c.l.b16 %v41
  %v87 = vpack.c.b16 %v72, %v71
  %v88 = vpack.c.b16 %v74, %v73
  %v89 = vpack.c.b16 %v76, %v75
  %v90 = vpack.c.b16 %v78, %v77
  %v91 = vpack.c.b16 %v80, %v79
  %v92 = vpack.c.b16 %v82, %v81
  %v93 = vpack.c.b16 %v84, %v83
  %v94 = vpack.c.b16 %v86, %v85
  %103 = vmatprep.subr.bf16.mxu0 0
  %104 = vmatpush1.bf16.msra.mxu0 %v87
  %105 = vmatprep.subr.bf16.mxu0 0
  %106 = vmatpush1.bf16.msra.mxu0 %v88
  %107 = vmatprep.subr.bf16.mxu0 0
  %108 = vmatpush1.bf16.msra.mxu0 %v89
  %109 = vmatprep.subr.bf16.mxu0 0
  %110 = vmatpush1.bf16.msra.mxu0 %v90
  %111 = vmatprep.subr.bf16.mxu0 0
  %112 = vmatpush1.bf16.msra.mxu0 %v91
  %113 = vmatprep.subr.bf16.mxu0 0
  %114 = vmatpush1.bf16.msra.mxu0 %v92
  %115 = vmatprep.subr.bf16.mxu0 0
  %116 = vmatpush1.bf16.msra.mxu0 %v93
  %117 = vmatprep.subr.bf16.mxu0 0
  %118 = vmatpush1.bf16.msra.mxu0 %v94
  %119 = vmatprep.subr.bf16.mxu0 0
  %120 = vmatpush1.bf16.msra.mxu0 0
  %121 = vmatprep.subr.bf16.mxu0 0
  %122 = vmatpush1.bf16.msra.mxu0 0
  %123 = vmatprep.subr.bf16.mxu0 0
  %124 = vmatpush1.bf16.msra.mxu0 0
  %125 = vmatprep.subr.bf16.mxu0 0
  %126 = vmatpush1.bf16.msra.mxu0 0
  %127 = vmatprep.subr.bf16.mxu0 0
  %128 = vmatpush1.bf16.msra.mxu0 0
  %129 = vmatprep.subr.bf16.mxu0 0
  %130 = vmatpush1.bf16.msra.mxu0 0
  %131 = vmatprep.subr.bf16.mxu0 0
  %132 = vmatpush1.bf16.msra.mxu0 0
  %133 = vmatprep.subr.bf16.mxu0 0
  %134 = vmatpush1.bf16.msra.mxu0 0
  %135 = vmatprep.mubr.bf16.mxu0 0
  %136 = vmatmul.mubr.bf16.gmra.mrb[0].mxu0 %v53
  %v137 = vpop.f32.mrb[0].mxu0
  %v138 = vadd.f32 %v47, %v137
  %v139 = vpop.f32.mrb[0].mxu0
  %v140 = vpop.f32.mrb[0].mxu0
  %v141 = vadd.f32 %v47, %v140
  %v142 = vpop.f32.mrb[0].mxu0
  %143 = vdwg.mxu0
  %v144 = vmax.f32 %v138, 0.0
  %v145 = vmax.f32 %v141, 0.0
  %v146 = vpack.c.bf16 %v145, %v144
  %v147 = vld [vmem:[%s4] sm:$0xf]
  %v148 = vld [vmem:[%s4 + $0x4] sm:$0xf]
  %v149 = vld [vmem:[%s4 + $0x8] sm:$0xf]
  %v150 = vld [vmem:[%s4 + $0xc] sm:$0xf]
  %v151 = vld [vmem:[%s4 + $0x10] sm:$0xf]
  %v152 = vld [vmem:[%s4 + $0x14] sm:$0xf]
  %v153 = vld [vmem:[%s4 + $0x18] sm:$0xf]
  %v154 = vld [vmem:[%s4 + $0x1c] sm:$0xf]
  %v155 = vld [vmem:[%s4 + $0x20] sm:$0xf]
  %v156 = vld [vmem:[%s4 + $0x24] sm:$0xf]
  %v157 = vld [vmem:[%s4 + $0x28] sm:$0xf]
  %v158 = vld [vmem:[%s4 + $0x2c] sm:$0xf]
  %v159 = vld [vmem:[%s4 + $0x30] sm:$0xf]
  %v160 = vld [vmem:[%s4 + $0x34] sm:$0xf]
  %v161 = vld [vmem:[%s4 + $0x38] sm:$0xf]
  %v162 = vld [vmem:[%s4 + $0x3c] sm:$0xf]
  %v163 = vld [vmem:[%s5] sm:$0x1]
  %v165 = vlaneseq
  %v166 = vshrl.u32 %v165, 7
  %v167 = vsub.s32 0, %v166
  %v168 = vrot.slane %v163, %v167
  %v186 = vunpack.c.l.b16 %v147
  %v187 = vunpack.c.l.b16 %v148
  %v188 = vunpack.c.l.b16 %v149
  %v189 = vunpack.c.l.b16 %v150
  %v190 = vunpack.c.l.b16 %v151
  %v191 = vunpack.c.l.b16 %v152
  %v192 = vunpack.c.l.b16 %v153
  %v193 = vunpack.c.l.b16 %v154
  %v194 = vunpack.c.l.b16 %v155
  %v195 = vunpack.c.l.b16 %v156
  %v196 = vunpack.c.l.b16 %v157
  %v197 = vunpack.c.l.b16 %v158
  %v198 = vunpack.c.l.b16 %v159
  %v199 = vunpack.c.l.b16 %v160
  %v200 = vunpack.c.l.b16 %v161
  %v201 = vunpack.c.l.b16 %v162
  %v202 = vpack.c.b16 %v187, %v186
  %v203 = vpack.c.b16 %v189, %v188
  %v204 = vpack.c.b16 %v191, %v190
  %v205 = vpack.c.b16 %v193, %v192
  %v206 = vpack.c.b16 %v195, %v194
  %v207 = vpack.c.b16 %v197, %v196
  %v208 = vpack.c.b16 %v199, %v198
  %v209 = vpack.c.b16 %v201, %v200
  %218 = vmatprep.subr.bf16.mxu0 0
  %219 = vmatpush1.bf16.msra.mxu0 %v202
  %220 = vmatprep.subr.bf16.mxu0 0
  %221 = vmatpush1.bf16.msra.mxu0 %v203
  %222 = vmatprep.subr.bf16.mxu0 0
  %223 = vmatpush1.bf16.msra.mxu0 %v204
  %224 = vmatprep.subr.bf16.mxu0 0
  %225 = vmatpush1.bf16.msra.mxu0 %v205
  %226 = vmatprep.subr.bf16.mxu0 0
  %227 = vmatpush1.bf16.msra.mxu0 %v206
  %228 = vmatprep.subr.bf16.mxu0 0
  %229 = vmatpush1.bf16.msra.mxu0 %v207
  %230 = vmatprep.subr.bf16.mxu0 0
  %231 = vmatpush1.bf16.msra.mxu0 %v208
  %232 = vmatprep.subr.bf16.mxu0 0
  %233 = vmatpush1.bf16.msra.mxu0 %v209
  %234 = vmatprep.subr.bf16.mxu0 0
  %235 = vmatpush1.bf16.msra.mxu0 0
  %236 = vmatprep.subr.bf16.mxu0 0
  %237 = vmatpush1.bf16.msra.mxu0 0
  %238 = vmatprep.subr.bf16.mxu0 0
  %239 = vmatpush1.bf16.msra.mxu0 0
  %240 = vmatprep.subr.bf16.mxu0 0
  %241 = vmatpush1.bf16.msra.mxu0 0
  %242 = vmatprep.subr.bf16.mxu0 0
  %243 = vmatpush1.bf16.msra.mxu0 0
  %244 = vmatprep.subr.bf16.mxu0 0
  %245 = vmatpush1.bf16.msra.mxu0 0
  %246 = vmatprep.subr.bf16.mxu0 0
  %247 = vmatpush1.bf16.msra.mxu0 0
  %248 = vmatprep.subr.bf16.mxu0 0
  %249 = vmatpush1.bf16.msra.mxu0 0
  %250 = vmatprep.mubr.bf16.mxu0 0
  %251 = vmatmul.mubr.bf16.gmra.mrb[0].mxu0 %v146
  %v252 = vpop.f32.mrb[0].mxu0
  %v253 = vadd.f32 %v168, %v252
  %v254 = vpop.f32.mrb[0].mxu0
  %v255 = vpop.f32.mrb[0].mxu0
  %v256 = vadd.f32 %v168, %v255
  %v257 = vpop.f32.mrb[0].mxu0
  %258 = vdwg.mxu0
  %v259 = vld [vmem:[%s1] sm:$0x1]
  %v260 = vlaneseq
  %v261 = vshrl.u32 %v260, 7
  %v262 = vlaneseq
  %v263 = vshrl.u32 %v262, 7
  %v264 = vsub.s32 0, %v263
  %v265 = vrot.slane %v259, %v264
  %vm266 = vcmp.eq.s32.totalorder %v265, %v261
  %v267 = vsel %vm266, 1, 0
  %v268 = vcvt.s32.f32 %v267
  %vm269 = vcmask 60416
  %v270 = vsel %vm269, %v268, 0.0
  %271 = vadd.xlane.f32.xlu0 %v270
  %v272 = vpop.xlane.xlu0 %271
  %v273 = vrcp.pop %v272
  %v274 = vmul.f32 1.0, %v273
  %vm275 = vcmask 64512
  %v277 = vsel %vm275, %v268, 0
  %279 = vmatprep.subr.mxu0 0.0
  %280 = vmatpush1.msra.mxu0 %v253
  %281 = vmatprep.subr.mxu0 0.0
  %282 = vmatpush1.msra.mxu0 0.0
  %283 = vmatprep.subr.mxu0 0.0
  %284 = vmatpush1.msra.mxu0 0.0
  %285 = vmatprep.subr.mxu0 0.0
  %286 = vmatpush1.msra.mxu0 0.0
  %287 = vmatprep.subr.mxu0 0.0
  %288 = vmatpush1.msra.mxu0 0.0
  %289 = vmatprep.subr.mxu0 0.0
  %290 = vmatpush1.msra.mxu0 0.0
  %291 = vmatprep.subr.mxu0 0.0
  %292 = vmatpush1.msra.mxu0 0.0
  %293 = vmatprep.subr.mxu0 0.0
  %294 = vmatpush1.msra.mxu0 0.0
  %295 = vmatprep.subr.mxu0 0.0
  %296 = vmatpush1.msra.mxu0 0.0
  %297 = vmatprep.subr.mxu0 0.0
  %298 = vmatpush1.msra.mxu0 0.0
  %299 = vmatprep.subr.mxu0 0.0
  %300 = vmatpush1.msra.mxu0 0.0
  %301 = vmatprep.subr.mxu0 0.0
  %302 = vmatpush1.msra.mxu0 0.0
  %303 = vmatprep.subr.mxu0 0.0
  %304 = vmatpush1.msra.mxu0 0.0
  %305 = vmatprep.subr.mxu0 0.0
  %306 = vmatpush1.msra.mxu0 0.0
  %307 = vmatprep.subr.mxu0 0.0
  %308 = vmatpush1.msra.mxu0 0.0
  %309 = vmatprep.subr.mxu0 0.0
  %310 = vmatpush1.msra.mxu0 0.0
  %311 = vmatprep.subr.mxu0 0.0
  %312 = vmatpush1.msra.mxu0 0.0
  %313 = vmatprep.subr.mxu0 0.0
  %314 = vmatpush1.msra.mxu0 0.0
  %315 = vmatprep.subr.mxu0 0.0
  %316 = vmatpush1.msra.mxu0 0.0
  %317 = vmatprep.subr.mxu0 0.0
  %318 = vmatpush1.msra.mxu0 0.0
  %319 = vmatprep.subr.mxu0 0.0
  %320 = vmatpush1.msra.mxu0 0.0
  %321 = vmatprep.subr.mxu0 0.0
  %322 = vmatpush1.msra.mxu0 0.0
  %323 = vmatprep.subr.mxu0 0.0
  %324 = vmatpush1.msra.mxu0 0.0
  %325 = vmatprep.subr.mxu0 0.0
  %326 = vmatpush1.msra.mxu0 0.0
  %327 = vmatprep.subr.mxu0 0.0
  %328 = vmatpush1.msra.mxu0 0.0
  %329 = vmatprep.subr.mxu0 0.0
  %330 = vmatpush1.msra.mxu0 0.0
  %331 = vmatprep.subr.mxu0 0.0
  %332 = vmatpush1.msra.mxu0 0.0
  %333 = vmatprep.subr.mxu0 0.0
  %334 = vmatpush1.msra.mxu0 0.0
  %335 = vmatprep.subr.mxu0 0.0
  %336 = vmatpush1.msra.mxu0 0.0
  %337 = vmatprep.subr.mxu0 0.0
  %338 = vmatpush1.msra.mxu0 0.0
  %339 = vmatprep.subr.mxu0 0.0
  %340 = vmatpush1.msra.mxu0 0.0
  %341 = vmatprep.subr.mxu0 0.0
  %342 = vmatpush1.msra.mxu0 0.0
  %343 = vmatprep.mubr.f32.mxu0 0.0
  %344 = vmatmul.mubr.f32.gmra.mrb[0].mxu0 %v277
  %v345 = vpop.f32.mrb[0].mxu0
  %v346 = vadd.f32 0.0, %v345
  %v347 = vpop.f32.mrb[0].mxu0
  %348 = vdwg.mxu0
  %v349 = vmul.f32 %v346, %v274
  %v350 = vmul.f32 %v349, %v349
  %vm351 = vcmask 1043456
  %v352 = vsel %vm351, %v350, 0.0
  %353 = vadd.xlane.f32.xlu0 %v352
  %v354 = vpop.xlane.xlu0 %353
  %v355 = vlaneseq
  %v356 = vand.u32 %v355, 127
  %vm357 = vcmp.eq.s32.totalorder %v356, 32
  %v358 = vsel %vm357, %v354, %v349
  %v359 = vmul.f32 %v256, -2.0
  %v360 = vsel %vm357, 1.0, %v359
  %361 = vmatprep.subr.mxu0 0.0
  %362 = vmatpush1.xpose.msra.mxu0 %v358
  %363 = vmatprep.subr.mxu0 0.0
  %364 = vmatpush1.xpose.msra.mxu0 0.0
  %365 = vmatprep.subr.mxu0 0.0
  %366 = vmatpush1.xpose.msra.mxu0 0.0
  %367 = vmatprep.subr.mxu0 0.0
  %368 = vmatpush1.xpose.msra.mxu0 0.0
  %369 = vmatprep.subr.mxu0 0.0
  %370 = vmatpush1.xpose.msra.mxu0 0.0
  %371 = vmatprep.subr.mxu0 0.0
  %372 = vmatpush1.xpose.msra.mxu0 0.0
  %373 = vmatprep.subr.mxu0 0.0
  %374 = vmatpush1.xpose.msra.mxu0 0.0
  %375 = vmatprep.subr.mxu0 0.0
  %376 = vmatpush1.xpose.msra.mxu0 0.0
  %377 = vmatprep.subr.mxu0 0.0
  %378 = vmatpush1.xpose.msra.mxu0 0.0
  %379 = vmatprep.subr.mxu0 0.0
  %380 = vmatpush1.xpose.msra.mxu0 0.0
  %381 = vmatprep.subr.mxu0 0.0
  %382 = vmatpush1.xpose.msra.mxu0 0.0
  %383 = vmatprep.subr.mxu0 0.0
  %384 = vmatpush1.xpose.msra.mxu0 0.0
  %385 = vmatprep.subr.mxu0 0.0
  %386 = vmatpush1.xpose.msra.mxu0 0.0
  %387 = vmatprep.subr.mxu0 0.0
  %388 = vmatpush1.xpose.msra.mxu0 0.0
  %389 = vmatprep.subr.mxu0 0.0
  %390 = vmatpush1.xpose.msra.mxu0 0.0
  %391 = vmatprep.subr.mxu0 0.0
  %392 = vmatpush1.xpose.msra.mxu0 0.0
  %393 = vmatprep.subr.mxu0 0.0
  %394 = vmatpush1.xpose.msra.mxu0 0.0
  %395 = vmatprep.subr.mxu0 0.0
  %396 = vmatpush1.xpose.msra.mxu0 0.0
  %397 = vmatprep.subr.mxu0 0.0
  %398 = vmatpush1.xpose.msra.mxu0 0.0
  %399 = vmatprep.subr.mxu0 0.0
  %400 = vmatpush1.xpose.msra.mxu0 0.0
  %401 = vmatprep.subr.mxu0 0.0
  %402 = vmatpush1.xpose.msra.mxu0 0.0
  %403 = vmatprep.subr.mxu0 0.0
  %404 = vmatpush1.xpose.msra.mxu0 0.0
  %405 = vmatprep.subr.mxu0 0.0
  %406 = vmatpush1.xpose.msra.mxu0 0.0
  %407 = vmatprep.subr.mxu0 0.0
  %408 = vmatpush1.xpose.msra.mxu0 0.0
  %409 = vmatprep.subr.mxu0 0.0
  %410 = vmatpush1.xpose.msra.mxu0 0.0
  %411 = vmatprep.subr.mxu0 0.0
  %412 = vmatpush1.xpose.msra.mxu0 0.0
  %413 = vmatprep.subr.mxu0 0.0
  %414 = vmatpush1.xpose.msra.mxu0 0.0
  %415 = vmatprep.subr.mxu0 0.0
  %416 = vmatpush1.xpose.msra.mxu0 0.0
  %417 = vmatprep.subr.mxu0 0.0
  %418 = vmatpush1.xpose.msra.mxu0 0.0
  %419 = vmatprep.subr.mxu0 0.0
  %420 = vmatpush1.xpose.msra.mxu0 0.0
  %421 = vmatprep.subr.mxu0 0.0
  %422 = vmatpush1.xpose.msra.mxu0 0.0
  %423 = vmatprep.subr.mxu0 0.0
  %424 = vmatpush1.xpose.msra.mxu0 0.0
  %425 = vmatprep.mubr.f32.mxu0 0.0
  %426 = vmatmul.mubr.f32.gmra.mrb[0].mxu0 %v360
  %v427 = vpop.f32.mrb[0].mxu0
  %v428 = vadd.f32 0.0, %v427
  %v429 = vpop.f32.mrb[0].mxu0
  %430 = vdwg.mxu0
  %vm431 = vcmask 31744
  %v432 = vsel %vm431, %v428, inf
  %433 = vmin.xlane.f32.xlu0 %v432
  %v434 = vpop.xlane.xlu0 %433
  %vm435 = vcmp.le.f32.partialorder %v428, %v434
  %v436 = vsel %vm435, %v356, 4
  %v437 = vsel %vm431, %v436, 2147483647
  %v438 = vand.u32 %v437, 65535
  %v439 = vshra.s32 %v437, 16
  %v440 = vcvt.s32.f32 %v438
  %v441 = vcvt.s32.f32 %v439
  %442 = vmin.xlane.f32.xlu0 %v441
  %v443 = vpop.xlane.xlu0 %442
  %vm444 = vcmp.eq.f32.partialorder %v441, %v443
  %v445 = vsel %vm444, %v440, inf
  %446 = vmin.xlane.f32.xlu0 %v445
  %v447 = vpop.xlane.xlu0 %446
  %v448 = vcvt.f32.s32 %v447
  %v449 = vcvt.f32.s32 %v443
  %v450 = vshll.u32 %v449, 16
  %v451 = vadd.s32 %v450, %v448
  %452 = vst [vmem:[%s6] sm:$0xff] %v451
  // Predicated region
  $region26: #{protonet_forward.1} parent=0 // pred_check
    _
  $region27: #{protonet_forward.1} parent=0 // pred_check_branch
    %454 = sbr.rel (0) target = $region29
  $region28: #{protonet_forward.1} parent=0 // pred_region
    _
  $region29: #{protonet_forward.1} parent=0 // pred_fallthru
    _
  // Predicated region
  $region30: #{protonet_forward.1} parent=0 // pred_check
    _
  $region31: #{protonet_forward.1} parent=0 // pred_check_branch
    %456 = sbr.rel (0) target = $region33
  $region32: #{protonet_forward.1} parent=0 // pred_region
    _
  $region33: #{protonet_forward.1} parent=0 // pred_fallthru
    _

</llo_original>
